<compile_context>
chip_gen: v5e
topology: v5e:2x2
jax: 0.10.0
libtpu: 0.0.40
codegen_flags: <defaults>
</compile_context>

<pallas_src>
import functools
import math

import jax
import jax.numpy as jnp
from jax.experimental import pallas as pl
from jax.experimental.pallas import tpu as pltpu


def _expand_kernel(x_ref, e_ref, o_ref):
    """o = x @ E, where E is the constant 0/1 nearest-neighbour expansion."""
    o_ref[...] = jnp.dot(
        x_ref[...], e_ref[...], preferred_element_type=jnp.float32
    ).astype(o_ref.dtype)


def _pick_fold(n_rows, w, scale):
    """How many input rows to fold into the lane dim for 128-lane density."""
    k_in = 128 // math.gcd(w, 128)                    # k*W       % 128 == 0
    k_out = 128 // math.gcd(scale * scale * w, 128)   # k*S*S*W   % 128 == 0
    if n_rows % k_in == 0 and k_in * w <= 512:
        return k_in            # input and output both lane-dense
    if n_rows % k_out == 0:
        return k_out           # output (the dominant traffic) lane-dense
    return math.gcd(n_rows, k_out)   # best power-of-two fold dividing n_rows


def _pick_row_block(n_rows, row_io_bytes, itemsize, resident_bytes,
                    vmem_budget_bytes=8 * 1024 * 1024, min_steps=8):
    """Row block: sublane-aligned, fits an 8 MiB double-buffered budget,
    leaves >= min_steps grid steps when possible, prefers a divisor of
    n_rows so the final block is not ragged/masked."""
    sub = {1: 32, 2: 16}.get(itemsize, 8)         # sublane pack granularity
    if n_rows <= sub:
        return n_rows
    budget = max(2 * row_io_bytes * sub,
                 vmem_budget_bytes - 2 * resident_bytes)
    cap_vmem = max(sub, (budget // (2 * row_io_bytes)) // sub * sub)
    cap_steps = max(sub, (n_rows // min_steps) // sub * sub)
    rb_max = max(sub, min(cap_vmem, cap_steps, (n_rows // sub) * sub))
    rb = rb_max
    while rb >= sub:                                # prefer an exact divisor
        if n_rows % rb == 0:
            return rb
        rb -= sub
    return rb_max                                   # ragged final block (masked)


@functools.partial(jax.jit, static_argnames=("scale", "row_block"))
def interpolate_nearest_int(x, *, scale=2, row_block=None):
    """Nearest-neighbor integer-factor spatial upsample of an NCHW tensor."""
    if x.ndim != 4:
        raise NotImplementedError("expected a 4-D NCHW tensor")
    if not jnp.issubdtype(x.dtype, jnp.floating):
        # TODO(synk): integer dtypes need a non-MXU duplication path.
        raise NotImplementedError("only floating dtypes are supported")

    N, C, H, W = x.shape
    S = int(scale)
    R = N * C * H

    k = _pick_fold(R, W, S)
    Rm = R // k                    # merged rows
    KW = k * W                     # merged input row width  (lanes)
    KO = k * S * S * W             # merged output row width (lanes)
    itemsize = x.dtype.itemsize

    x2 = x.reshape(Rm, KW)         # free reshape (row-major)

    # Constant 0/1 expansion matrix:  (x2 @ E)[g, c] = x2[g, src[c]],
    # where output column c = q*S*S*W + d*S*W + j*S + e maps to input
    # column q*W + j (q = folded row, d = row repeat, e = column repeat).
    cols = jnp.arange(KO)
    src = (cols // (S * S * W)) * W + (cols % (S * W)) // S
    E = (jnp.arange(KW)[:, None] == src[None, :]).astype(x.dtype)

    rb = row_block if row_block is not None else _pick_row_block(
        Rm, (KW + KO) * itemsize, itemsize, KW * KO * itemsize)
    grid = (pl.cdiv(Rm, rb),)

    y2 = pl.pallas_call(
        _expand_kernel,
        out_shape=jax.ShapeDtypeStruct((Rm, KO), x.dtype),
        grid=grid,
        in_specs=[
            pl.BlockSpec((rb, KW), lambda g: (g, 0)),
            pl.BlockSpec((KW, KO), lambda g: (0, 0)),   # resident constant E
        ],
        out_specs=pl.BlockSpec((rb, KO), lambda g: (g, 0)),
        compiler_params=pltpu.CompilerParams(
            dimension_semantics=("parallel",),
        ),
        cost_estimate=pl.CostEstimate(
            flops=2 * Rm * KW * KO,
            transcendentals=0,
            bytes_accessed=(R * W + R * S * S * W + KW * KO) * itemsize,
        ),
    )(x2, E)

    # Free reshape back: (Rm, KO) is the row-major flattening of
    # (N, C, S*H, S*W).
    return y2.reshape(N, C, S * H, S * W)


class Interpolate:
    """JAX/Pallas counterpart of the PyTorch Interpolate module."""

    def __init__(self, size=None, scale_factor=None, mode="nearest",
                 align_corners=None):
        # TODO(synk): only mode='nearest' with a positive integer
        # scale_factor (AlbuNet's decoder configuration) is implemented;
        # 'bilinear' or an explicit `size=` target needs a separate kernel.
        if mode != "nearest":
            raise NotImplementedError("only mode='nearest' is implemented")
        if size is not None or scale_factor is None or \
                int(scale_factor) != scale_factor or scale_factor < 1:
            raise NotImplementedError(
                "only a positive integer scale_factor is supported")
        self.scale_factor = int(scale_factor)
        self.mode = mode
        # PyTorch ignores align_corners for mode='nearest'; so do we.
        self.align_corners = align_corners

    def __call__(self, x):
        return interpolate_nearest_int(x, scale=self.scale_factor)


if __name__ == "__main__":
    key = jax.random.PRNGKey(0)
    N, C, H, W = 2, 4, 16, 16
    # bf16-representable f32 values keep the bit-exact comparison meaningful
    # regardless of how many MXU passes the compiler uses for f32 matmuls.
    x = jax.random.normal(key, (N, C, H, W), dtype=jnp.float32)
    x = x.astype(jnp.bfloat16).astype(jnp.float32)

    module = Interpolate(scale_factor=2, mode="nearest")
    y = jax.block_until_ready(module(x))

    ref = jnp.repeat(jnp.repeat(x, 2, axis=2), 2, axis=3)
    assert y.shape == (N, C, 2 * H, 2 * W)
    assert jnp.array_equal(y, ref), "mismatch vs reference nearest upsample"

    # Explicit multi-step tiled path (16 merged rows, block 8 -> 2 steps).
    y_tiled = jax.block_until_ready(
        interpolate_nearest_int(x, scale=2, row_block=8))
    assert jnp.array_equal(y_tiled, ref), "mismatch on tiled path"

    # Ragged grid: R = 1*5*32 = 160 rows, fold k=8 -> 20 merged rows,
    # default block 8 -> grid of 3 with a masked partial final block.
    x3 = jax.random.normal(jax.random.PRNGKey(1), (1, 5, 32, 16),
                           dtype=jnp.float32)
    x3 = x3.astype(jnp.bfloat16).astype(jnp.float32)
    y3 = jax.block_until_ready(interpolate_nearest_int(x3, scale=2))
    ref3 = jnp.repeat(jnp.repeat(x3, 2, axis=2), 2, axis=3)
    assert jnp.array_equal(y3, ref3), "mismatch on ragged-grid path"

    # bf16 input path (exact through the MXU by construction).
    xb = jax.random.normal(jax.random.PRNGKey(2), (2, 4, 16, 16),
                           dtype=jnp.bfloat16)
    yb = jax.block_until_ready(interpolate_nearest_int(xb, scale=2))
    refb = jnp.repeat(jnp.repeat(xb, 2, axis=2), 2, axis=3)
    assert jnp.array_equal(yb, refb), "mismatch on bf16 path"

    print("KERNEL_OK")
</pallas_src>

<mosaic_0001>
module attributes {stable_mosaic.version = 11 : i64} {
  func.func @_expand_kernel(%arg0: i32, %arg1: memref<8x128xf32, #tpu.memory_space<vmem>>, %arg2: memref<128x512xf32, #tpu.memory_space<vmem>>, %arg3: memref<8x512xf32, #tpu.memory_space<vmem>>) attributes {dimension_semantics = [#tpu.dimension_semantics<parallel>], iteration_bounds = array<i64: 2>, scalar_prefetch = 0 : i64, scratch_operands = 0 : i64, tpu.core_type = #tpu.core_type<tc>, window_params = [{transform_indices = @transform_0, window_bounds = array<i64: 8, 128>}, {pipeline_mode = #tpu.pipeline_mode<synchronous>, transform_indices = @transform_1, window_bounds = array<i64: 128, 512>}, {transform_indices = @transform_2, window_bounds = array<i64: 8, 512>}]} {
    %c0 = arith.constant 0 : index
    %c0_0 = arith.constant 0 : index
    %0 = vector.load %arg1[%c0, %c0_0] : memref<8x128xf32, #tpu.memory_space<vmem>>, vector<8x128xf32>
    %c0_1 = arith.constant 0 : index
    %c0_2 = arith.constant 0 : index
    %1 = vector.load %arg2[%c0_1, %c0_2] : memref<128x512xf32, #tpu.memory_space<vmem>>, vector<128x512xf32>
    %cst = arith.constant dense<0.000000e+00> : vector<8x512xf32>
    %2 = tpu.matmul %0, %1, %cst {dimension_numbers = #tpu.dot_dimension_numbers<[1], [0], [0], [1], [0, 0, 1, 1], [], []>} : vector<8x128xf32>, vector<128x512xf32>, vector<8x512xf32> -> vector<8x512xf32>
    %c0_3 = arith.constant 0 : index
    %c0_4 = arith.constant 0 : index
    %3 = vector.load %arg3[%c0_3, %c0_4] : memref<8x512xf32, #tpu.memory_space<vmem>>, vector<8x512xf32>
    tpu.vector_store %arg3[%c0_3, %c0_4], %2 {strides = array<i32>} : memref<8x512xf32, #tpu.memory_space<vmem>>, vector<8x512xf32>,
    return
  }
  func.func @transform_0(%arg0: i32) -> (i32, i32) {
    %c0_i32 = arith.constant 0 : i32
    %c0_i32_0 = arith.constant 0 : i32
    return %arg0, %c0_i32 : i32, i32
  }
  func.func @transform_1(%arg0: i32) -> (i32, i32) {
    %c0_i32 = arith.constant 0 : i32
    %c0_i32_0 = arith.constant 0 : i32
    %c0_i32_1 = arith.constant 0 : i32
    return %c0_i32, %c0_i32_0 : i32, i32
  }
  func.func @transform_2(%arg0: i32) -> (i32, i32) {
    %c0_i32 = arith.constant 0 : i32
    %c0_i32_0 = arith.constant 0 : i32
    return %arg0, %c0_i32 : i32, i32
  }
}

</mosaic_0001>

<llo_original>
// kernel: interpolate_nearest_int.1
$region0: #{interpolate_nearest_int.1}
  #allocation0 [shape = 'u32[]', space=smem, size = 0x4, offset = 0x4, fixed_abs, tag = 'smem constant byte address 0x4 - core index']
  #allocation1 [shape = 'u32[72,128]{1,0:T(1,128)}', space=vmem, size = 0x9000, scoped, tag = 'internal scratch']
  %s0 = inlined_call_operand.vmem [shape: f32[16,128], index: 0, kind: input, shape index: {}]
  %s1 = inlined_call_operand.vmem [shape: f32[128,512], index: 1, kind: input, shape index: {}]
  %s2 = inlined_call_operand.vmem [shape: f32[16,512], index: 2, kind: output, shape index: {}]
  %s3 = sld [smem:[#allocation0]]
  $region41: #{interpolate_nearest_int.1} parent=0
    _
  %s5 = ssub.s32 1, %s3
  %s6 = scalar_select 0, %s5, %s3
  loop: start=0, step=1, limit=4
  $region2: #{interpolate_nearest_int.1} parent=0 // loop_pre_header
    _
  $region3: #{interpolate_nearest_int.1} parent=0 // loop_header
    %s8 = sphi 0, %s12
    %p9 = scmp.ge.s32.totalorder %s8, 4
    %s18 = sphi 0, %s20
    %s21 = sphi 0, %s18
    %s22 = sphi 0, %s21
    %s38 = sphi 0, %s22
    %s42 = sphi 0, %s42
    %s44 = sphi 0, %s42
    %s45 = sphi 0, %s44
    %s59 = sphi 0, %s45
    %s65 = sphi 0, %s67
    %s68 = sphi 0, %s65
    %s69 = sphi 0, %s68
    %s85 = sphi 0, %s69
  $region4: #{interpolate_nearest_int.1} parent=0 // loop_header_branch
    %11 = sbr.rel (%p9) target = $region8
  $region5: #{interpolate_nearest_int.1} parent=0 // loop_body
    %s13 = ssub.s32 %s8, 1
    %s14 = ssub.s32 %s8, 2
    %s15 = sadd.s32 %s8, 1
    %s16 = ssub.s32 %s8, %s15
    %p17 = scmp.eq.s32.totalorder %s16, 0
    %s19 = sadd.s32 %s18, 1
    %s20 = scalar_select %p17, %s18, %s19
    %p23 = pneg %p17
    %p24 = scmp.eq.s32.totalorder %s8, 1
    %p25 = por %p23, %p24
    %p26 = scmp.ne.s32.totalorder %s18, %s21
    %p27 = scmp.eq.s32.totalorder %s8, 0
    %p28 = por %p26, %p27
    %p29 = scmp.ne.s32.totalorder %s18, %s21
    %p30 = scmp.eq.s32.totalorder %s13, 1
    %p31 = por %p29, %p30
    %p32 = scmp.ne.s32.totalorder %s21, %s22
    %p33 = scmp.eq.s32.totalorder %s13, 0
    %p34 = por %p32, %p33
    %p35 = scmp.ne.s32.totalorder %s21, %s22
    %p36 = scmp.eq.s32.totalorder %s14, 1
    %p37 = por %p35, %p36
    %p39 = scmp.ne.s32.totalorder %s22, %s38
    %p40 = scmp.eq.s32.totalorder %s14, 0
    %p41 = por %p39, %p40
    %s43 = sadd.s32 %s42, 1
    %p46 = scmp.eq.s32.totalorder %s8, 1
    %p47 = scmp.ne.s32.totalorder %s42, %s44
    %p48 = scmp.eq.s32.totalorder %s8, 0
    %p49 = por %p47, %p48
    %p50 = scmp.ne.s32.totalorder %s42, %s44
    %p51 = scmp.eq.s32.totalorder %s13, 1
    %p52 = por %p50, %p51
    %p53 = scmp.ne.s32.totalorder %s44, %s45
    %p54 = scmp.eq.s32.totalorder %s13, 0
    %p55 = por %p53, %p54
    %p56 = scmp.ne.s32.totalorder %s44, %s45
    %p57 = scmp.eq.s32.totalorder %s14, 1
    %p58 = por %p56, %p57
    %p60 = scmp.ne.s32.totalorder %s45, %s59
    %p61 = scmp.eq.s32.totalorder %s14, 0
    %p62 = por %p60, %p61
    %s63 = ssub.s32 %s8, %s15
    %p64 = scmp.eq.s32.totalorder %s63, 0
    %s66 = sadd.s32 %s65, 1
    %s67 = scalar_select %p64, %s65, %s66
    %p70 = pneg %p64
    %p71 = scmp.eq.s32.totalorder %s8, 1
    %p72 = por %p70, %p71
    %p73 = scmp.ne.s32.totalorder %s65, %s68
    %p74 = scmp.eq.s32.totalorder %s8, 0
    %p75 = por %p73, %p74
    %p76 = scmp.ne.s32.totalorder %s65, %s68
    %p77 = scmp.eq.s32.totalorder %s13, 1
    %p78 = por %p76, %p77
    %p79 = scmp.ne.s32.totalorder %s68, %s69
    %p80 = scmp.eq.s32.totalorder %s13, 0
    %p81 = por %p79, %p80
    %p82 = scmp.ne.s32.totalorder %s68, %s69
    %p83 = scmp.eq.s32.totalorder %s14, 1
    %p84 = por %p82, %p83
    %p86 = scmp.ne.s32.totalorder %s69, %s85
    %p87 = scmp.eq.s32.totalorder %s14, 0
    %p88 = por %p86, %p87
    %p89 = scmp.le.s32.totalorder 1, %s8
    %p90 = scmp.lt.s32.totalorder %s8, 3
    %p91 = pnand %p89, %p90
    %p92 = pneg %p91
    // Predicated region
    $region9: #{interpolate_nearest_int.1} parent=5 // pred_check
      _
    $region10: #{interpolate_nearest_int.1} parent=5 // pred_check_branch
      %94 = sbr.rel (%p91) target = $region12
    $region11: #{interpolate_nearest_int.1} parent=5 // pred_region
      %s95 = ssub.s32 %s8, 1
      // Predicated region
      $region13: #{interpolate_nearest_int.1} parent=11 // pred_check
        %p96 = pneg %p55
      $region14: #{interpolate_nearest_int.1} parent=11 // pred_check_branch
        %98 = sbr.rel (%p96) target = $region16
      $region15: #{interpolate_nearest_int.1} parent=11 // pred_region
        _
      $region16: #{interpolate_nearest_int.1} parent=11 // pred_fallthru
        _
    $region12: #{interpolate_nearest_int.1} parent=5 // pred_fallthru
      _
    %p99 = scmp.lt.s32.totalorder %s8, 2
    // Predicated region
    $region17: #{interpolate_nearest_int.1} parent=5 // pred_check
      %p100 = pneg %p99
    $region18: #{interpolate_nearest_int.1} parent=5 // pred_check_branch
      %102 = sbr.rel (%p100) target = $region20
    $region19: #{interpolate_nearest_int.1} parent=5 // pred_region
      // Predicated region
      $region21: #{interpolate_nearest_int.1} parent=19 // pred_check
        %p103 = pneg %p28
      $region22: #{interpolate_nearest_int.1} parent=19 // pred_check_branch
        %105 = sbr.rel (%p103) target = $region24
      $region23: #{interpolate_nearest_int.1} parent=19 // pred_region
        %p106 = scmp.lt.s32.totalorder %s8, 1
        %s107 = scalar_select %p106, %s8, 1
        %s108 = smul.addr %s107, 8
        %s109 = scalar_lea.vmem %s0, %s108
      $region24: #{interpolate_nearest_int.1} parent=19 // pred_fallthru
        _
    $region20: #{interpolate_nearest_int.1} parent=5 // pred_fallthru
      _
    %p110 = scmp.le.s32.totalorder 1, %s8
    %p111 = scmp.lt.s32.totalorder %s8, 3
    %p112 = pnand %p110, %p111
    %p113 = pneg %p112
    // Predicated region
    $region25: #{interpolate_nearest_int.1} parent=5 // pred_check
      _
    $region26: #{interpolate_nearest_int.1} parent=5 // pred_check_branch
      %115 = sbr.rel (%p112) target = $region28
    $region27: #{interpolate_nearest_int.1} parent=5 // pred_region
      %s116 = ssub.s32 %s8, 1
      %p117 = scmp.lt.s32.totalorder %s13, 1
      %s118 = scalar_select %p117, %s13, 1
      %s119 = smul.addr %s118, 8
      %s120 = scalar_lea.vmem %s0, %s119
      %p121 = pneg %p34
      %p122 = pneg %p31
      %p123 = pneg %p55
      %p124 = pneg %p52
      %p125 = pneg %p81
      %p126 = pneg %p78
      %p127 = scmp.lt.s32.totalorder %s13, 1
      %s128 = scalar_select %p127, %s13, 1
      %s129 = smul.addr %s128, 4
      %s130 = smul.addr %s129, 8
      %s131 = scalar_lea.vmem %s2, %s130
      %p132 = scmp.lt.s32.totalorder %s13, 1
      %s133 = scalar_select %p132, %s13, 1
      %s134 = smul.addr %s133, 8
      %s135 = scalar_lea.vmem %s0, %s134
      %p136 = scmp.lt.s32.totalorder %s13, 1
      %s137 = scalar_select %p136, %s13, 1
      %s138 = smul.addr %s137, 4
      %s139 = smul.addr %s138, 8
      %s140 = scalar_lea.vmem %s2, %s139
      %v141 = vld [vmem:[%s135] sm:$0xff]
      %v142 = vld [vmem:[%s1] sm:$0xff]
      %v143 = vld [vmem:[%s1 + $0x8] sm:$0xff]
      %v144 = vld [vmem:[%s1 + $0x10] sm:$0xff]
      %v145 = vld [vmem:[%s1 + $0x18] sm:$0xff]
      %v146 = vld [vmem:[%s1 + $0x20] sm:$0xff]
      %v147 = vld [vmem:[%s1 + $0x28] sm:$0xff]
      %v148 = vld [vmem:[%s1 + $0x30] sm:$0xff]
      %v149 = vld [vmem:[%s1 + $0x38] sm:$0xff]
      %v150 = vld [vmem:[%s1 + $0x40] sm:$0xff]
      %v151 = vld [vmem:[%s1 + $0x48] sm:$0xff]
      %v152 = vld [vmem:[%s1 + $0x50] sm:$0xff]
      %v153 = vld [vmem:[%s1 + $0x58] sm:$0xff]
      %v154 = vld [vmem:[%s1 + $0x60] sm:$0xff]
      %v155 = vld [vmem:[%s1 + $0x68] sm:$0xff]
      %v156 = vld [vmem:[%s1 + $0x70] sm:$0xff]
      %v157 = vld [vmem:[%s1 + $0x78] sm:$0xff]
      %v158 = vld [vmem:[%s1 + $0x80] sm:$0xff]
      %v159 = vld [vmem:[%s1 + $0x88] sm:$0xff]
      %v160 = vld [vmem:[%s1 + $0x90] sm:$0xff]
      %v161 = vld [vmem:[%s1 + $0x98] sm:$0xff]
      %v162 = vld [vmem:[%s1 + $0xa0] sm:$0xff]
      %v163 = vld [vmem:[%s1 + $0xa8] sm:$0xff]
      %v164 = vld [vmem:[%s1 + $0xb0] sm:$0xff]
      %v165 = vld [vmem:[%s1 + $0xb8] sm:$0xff]
      %v166 = vld [vmem:[%s1 + $0xc0] sm:$0xff]
      %v167 = vld [vmem:[%s1 + $0xc8] sm:$0xff]
      %v168 = vld [vmem:[%s1 + $0xd0] sm:$0xff]
      %v169 = vld [vmem:[%s1 + $0xd8] sm:$0xff]
      %v170 = vld [vmem:[%s1 + $0xe0] sm:$0xff]
      %v171 = vld [vmem:[%s1 + $0xe8] sm:$0xff]
      %v172 = vld [vmem:[%s1 + $0xf0] sm:$0xff]
      %v173 = vld [vmem:[%s1 + $0xf8] sm:$0xff]
      %v174 = vld [vmem:[%s1 + $0x100] sm:$0xff]
      %v175 = vld [vmem:[%s1 + $0x108] sm:$0xff]
      %v176 = vld [vmem:[%s1 + $0x110] sm:$0xff]
      %v177 = vld [vmem:[%s1 + $0x118] sm:$0xff]
      %v178 = vld [vmem:[%s1 + $0x120] sm:$0xff]
      %v179 = vld [vmem:[%s1 + $0x128] sm:$0xff]
      %v180 = vld [vmem:[%s1 + $0x130] sm:$0xff]
      %v181 = vld [vmem:[%s1 + $0x138] sm:$0xff]
      %v182 = vld [vmem:[%s1 + $0x140] sm:$0xff]
      %v183 = vld [vmem:[%s1 + $0x148] sm:$0xff]
      %v184 = vld [vmem:[%s1 + $0x150] sm:$0xff]
      %v185 = vld [vmem:[%s1 + $0x158] sm:$0xff]
      %v186 = vld [vmem:[%s1 + $0x160] sm:$0xff]
      %v187 = vld [vmem:[%s1 + $0x168] sm:$0xff]
      %v188 = vld [vmem:[%s1 + $0x170] sm:$0xff]
      %v189 = vld [vmem:[%s1 + $0x178] sm:$0xff]
      %v190 = vld [vmem:[%s1 + $0x180] sm:$0xff]
      %v191 = vld [vmem:[%s1 + $0x188] sm:$0xff]
      %v192 = vld [vmem:[%s1 + $0x190] sm:$0xff]
      %v193 = vld [vmem:[%s1 + $0x198] sm:$0xff]
      %v194 = vld [vmem:[%s1 + $0x1a0] sm:$0xff]
      %v195 = vld [vmem:[%s1 + $0x1a8] sm:$0xff]
      %v196 = vld [vmem:[%s1 + $0x1b0] sm:$0xff]
      %v197 = vld [vmem:[%s1 + $0x1b8] sm:$0xff]
      %v198 = vld [vmem:[%s1 + $0x1c0] sm:$0xff]
      %v199 = vld [vmem:[%s1 + $0x1c8] sm:$0xff]
      %v200 = vld [vmem:[%s1 + $0x1d0] sm:$0xff]
      %v201 = vld [vmem:[%s1 + $0x1d8] sm:$0xff]
      %v202 = vld [vmem:[%s1 + $0x1e0] sm:$0xff]
      %v203 = vld [vmem:[%s1 + $0x1e8] sm:$0xff]
      %v204 = vld [vmem:[%s1 + $0x1f0] sm:$0xff]
      %v205 = vld [vmem:[%s1 + $0x1f8] sm:$0xff]
      %206 = vmatpush.msra.mxu0 %v202
      %207 = vmatpush.msra.mxu0 %v198
      %208 = vmatpush.msra.mxu0 %v194
      %209 = vmatpush.msra.mxu0 %v190
      %210 = vmatpush.msra.mxu0 %v186
      %211 = vmatpush.msra.mxu0 %v182
      %212 = vmatpush.msra.mxu0 %v178
      %213 = vmatpush.msra.mxu0 %v174
      %214 = vmatpush.msra.mxu0 %v170
      %215 = vmatpush.msra.mxu0 %v166
      %216 = vmatpush.msra.mxu0 %v162
      %217 = vmatpush.msra.mxu0 %v158
      %218 = vmatpush.msra.mxu0 %v154
      %219 = vmatpush.msra.mxu0 %v150
      %220 = vmatpush.msra.mxu0 %v146
      %221 = vmatpush.msra.mxu0 %v142
      %222 = vmatmul.f32.gmra.mxu0 %v141
      %v223 = vpop.f32.mrf.mxu0
      %v224 = vadd.f32 0.0, %v223
      %225 = vdwg.mxu0
      %226 = vmatpush.msra.mxu0 %v203
      %227 = vmatpush.msra.mxu0 %v199
      %228 = vmatpush.msra.mxu0 %v195
      %229 = vmatpush.msra.mxu0 %v191
      %230 = vmatpush.msra.mxu0 %v187
      %231 = vmatpush.msra.mxu0 %v183
      %232 = vmatpush.msra.mxu0 %v179
      %233 = vmatpush.msra.mxu0 %v175
      %234 = vmatpush.msra.mxu0 %v171
      %235 = vmatpush.msra.mxu0 %v167
      %236 = vmatpush.msra.mxu0 %v163
      %237 = vmatpush.msra.mxu0 %v159
      %238 = vmatpush.msra.mxu0 %v155
      %239 = vmatpush.msra.mxu0 %v151
      %240 = vmatpush.msra.mxu0 %v147
      %241 = vmatpush.msra.mxu0 %v143
      %242 = vmatmul.f32.gmra.mxu0 %v141
      %v243 = vpop.f32.mrf.mxu0
      %v244 = vadd.f32 0.0, %v243
      %245 = vdwg.mxu0
      %246 = vmatpush.msra.mxu0 %v204
      %247 = vmatpush.msra.mxu0 %v200
      %248 = vmatpush.msra.mxu0 %v196
      %249 = vmatpush.msra.mxu0 %v192
      %250 = vmatpush.msra.mxu0 %v188
      %251 = vmatpush.msra.mxu0 %v184
      %252 = vmatpush.msra.mxu0 %v180
      %253 = vmatpush.msra.mxu0 %v176
      %254 = vmatpush.msra.mxu0 %v172
      %255 = vmatpush.msra.mxu0 %v168
      %256 = vmatpush.msra.mxu0 %v164
      %257 = vmatpush.msra.mxu0 %v160
      %258 = vmatpush.msra.mxu0 %v156
      %259 = vmatpush.msra.mxu0 %v152
      %260 = vmatpush.msra.mxu0 %v148
      %261 = vmatpush.msra.mxu0 %v144
      %262 = vmatmul.f32.gmra.mxu0 %v141
      %v263 = vpop.f32.mrf.mxu0
      %v264 = vadd.f32 0.0, %v263
      %265 = vdwg.mxu0
      %266 = vmatpush.msra.mxu0 %v205
      %267 = vmatpush.msra.mxu0 %v201
      %268 = vmatpush.msra.mxu0 %v197
      %269 = vmatpush.msra.mxu0 %v193
      %270 = vmatpush.msra.mxu0 %v189
      %271 = vmatpush.msra.mxu0 %v185
      %272 = vmatpush.msra.mxu0 %v181
      %273 = vmatpush.msra.mxu0 %v177
      %274 = vmatpush.msra.mxu0 %v173
      %275 = vmatpush.msra.mxu0 %v169
      %276 = vmatpush.msra.mxu0 %v165
      %277 = vmatpush.msra.mxu0 %v161
      %278 = vmatpush.msra.mxu0 %v157
      %279 = vmatpush.msra.mxu0 %v153
      %280 = vmatpush.msra.mxu0 %v149
      %281 = vmatpush.msra.mxu0 %v145
      %282 = vmatmul.f32.gmra.mxu0 %v141
      %v283 = vpop.f32.mrf.mxu0
      %v284 = vadd.f32 0.0, %v283
      %285 = vdwg.mxu0
      %286 = vst [vmem:[%s140] sm:$0xff] %v224
      %287 = vst [vmem:[%s140 + $0x8] sm:$0xff] %v244
      %288 = vst [vmem:[%s140 + $0x10] sm:$0xff] %v264
      %289 = vst [vmem:[%s140 + $0x18] sm:$0xff] %v284
      %p290 = scmp.lt.s32.totalorder %s13, 1
      %s291 = scalar_select %p290, %s13, 1
      %s292 = smul.addr %s291, 4
      %s293 = smul.addr %s292, 8
      %s294 = scalar_lea.vmem %s2, %s293
      // Predicated region
      $region29: #{interpolate_nearest_int.1} parent=27 // pred_check
        %p295 = pneg %p78
      $region30: #{interpolate_nearest_int.1} parent=27 // pred_check_branch
        %297 = sbr.rel (%p295) target = $region32
      $region31: #{interpolate_nearest_int.1} parent=27 // pred_region
        _
      $region32: #{interpolate_nearest_int.1} parent=27 // pred_fallthru
        _
    $region28: #{interpolate_nearest_int.1} parent=5 // pred_fallthru
      _
    %p298 = scmp.le.s32.totalorder 2, %s8
    // Predicated region
    $region33: #{interpolate_nearest_int.1} parent=5 // pred_check
      %p299 = pneg %p298
    $region34: #{interpolate_nearest_int.1} parent=5 // pred_check_branch
      %301 = sbr.rel (%p299) target = $region36
    $region35: #{interpolate_nearest_int.1} parent=5 // pred_region
      %s302 = ssub.s32 %s8, 2
      // Predicated region
      $region37: #{interpolate_nearest_int.1} parent=35 // pred_check
        %p303 = pneg %p84
      $region38: #{interpolate_nearest_int.1} parent=35 // pred_check_branch
        %305 = sbr.rel (%p303) target = $region40
      $region39: #{interpolate_nearest_int.1} parent=35 // pred_region
        %p306 = scmp.lt.s32.totalorder %s14, 1
        %s307 = scalar_select %p306, %s14, 1
        %s308 = smul.addr %s307, 4
        %s309 = smul.addr %s308, 8
        %s310 = scalar_lea.vmem %s2, %s309
      $region40: #{interpolate_nearest_int.1} parent=35 // pred_fallthru
        _
    $region36: #{interpolate_nearest_int.1} parent=5 // pred_fallthru
      _
  $region6: #{interpolate_nearest_int.1} parent=0 // loop_footer
    %s12 = sadd.s32 1, %s8
  $region7: #{interpolate_nearest_int.1} parent=0 // loop_footer_branch
    %7 = sbr.rel target = $region3
  $region8: #{interpolate_nearest_int.1} parent=0 // loop_exit
    _

</llo_original>
